<compile_context>
chip_gen: v7x
topology: tpu7x:2x2x1
jax: 0.10.0
libtpu: 0.0.40
codegen_flags: <defaults>
</compile_context>

<pallas_src>
import functools

import jax
import jax.numpy as jnp
from jax.experimental import pallas as pl
from jax.experimental.pallas import tpu as pltpu


def tcn_kernel(x1_ref, w1_ref, b1_ref, w2_ref, b2_ref, t_ref, fcw_ref, sel_ref,
               fcb_ref, out_ref):
    """Fused TCN forward (eval mode) for all batch elements at once.

    x1_ref  : (K*Cin, B*L1)   conv1 im2col, batch folded along lanes
    w1_ref  : (C, K*Cin)      conv1 weight, tap-major columns
    b1_ref  : (C, 1)
    w2_ref  : (C, K*C)        conv2 weight, tap-major columns
    b2_ref  : (C, 1)
    t_ref   : (K, B*L1, B*L2) per-tap shift/zero-pad matrices (block-diag over batch)
    fcw_ref : (C, B*L2)       fc weight reshaped to (C, L2), tiled across batch lanes
    sel_ref : (B*L2, B)       per-batch column-selection matrix (lane reduce)
    fcb_ref : (1,) in SMEM    fc bias scalar
    out_ref : (1, B)
    """
    K = t_ref.shape[0]

    # ---- conv1 + bias + ReLU: one matmul serves all taps and all batch elements ----
    y1 = jnp.dot(w1_ref[...], x1_ref[...], preferred_element_type=jnp.float32)
    y1 = jnp.maximum(y1 + b1_ref[...], 0.0)                       # (C, B*L1)
    # TODO(synk): dropout is eval-mode identity; training would need pltpu.prng_* masking.

    # ---- conv2 im2col built in registers (no VMEM scratch round-trip) ----
    # X2[k*C + c, b*L2 + t] == zero-padded/shifted y1 window == (y1 @ T[k]) stacked over k.
    x2 = jnp.concatenate(
        [jnp.dot(y1, t_ref[k], preferred_element_type=jnp.float32) for k in range(K)],
        axis=0)                                                   # (K*C, B*L2)

    # ---- conv2 + bias + ReLU: one matmul ----
    y2 = jnp.dot(w2_ref[...], x2, preferred_element_type=jnp.float32)
    y2 = jnp.maximum(y2 + b2_ref[...], 0.0)                       # (C, B*L2)
    # dropout: eval-mode identity

    # ---- fc over the row-major flatten of (C, L2), all batch elements, one store ----
    prod = y2 * fcw_ref[...]                                      # (C, B*L2)
    per_c = jnp.dot(prod, sel_ref[...], preferred_element_type=jnp.float32)   # (C, B)
    out_ref[...] = jnp.sum(per_c, axis=0, keepdims=True) + fcb_ref[0]         # (1, B)


@functools.partial(jax.jit, static_argnums=2)
def tcn_forward(x, params, kernel_size):
    """x: (B, num_inputs, L) float32 -> (B, 1) float32 (eval-mode forward)."""
    w1, b1, w2, b2, fcw, fcb = params
    B, Cin, L = x.shape
    K = kernel_size
    C = w1.shape[0]
    pad = K - 1
    L1 = L + pad                 # conv1 output length
    L2 = L1 + pad                # conv2 output length
    BL1, BL2 = B * L1, B * L2
    f32 = jnp.float32

    # -------- input-side glue: conv1 im2col with batch folded into lanes --------
    x_pad = jnp.pad(x.astype(f32), ((0, 0), (0, 0), (pad, pad)))           # (B, Cin, L+2p)
    X1 = jnp.stack([x_pad[:, :, k:k + L1] for k in range(K)], axis=0)       # (K, B, Cin, L1)
    X1 = X1.transpose(0, 2, 1, 3).reshape(K * Cin, BL1)                     # (K*Cin, B*L1)

    # -------- parameter re-layout (input-independent glue) --------
    W1 = jnp.transpose(w1.astype(f32), (0, 2, 1)).reshape(C, K * Cin)       # [co, k*Cin+ci]
    W2 = jnp.transpose(w2.astype(f32), (0, 2, 1)).reshape(C, K * C)         # [co, k*C +ci]
    b1c = b1.reshape(C, 1).astype(f32)
    b2c = b2.reshape(C, 1).astype(f32)

    # Per-tap shift/zero-pad matrices: T[k, a*L1+i, b*L2+t] = (a == b) * (i == t + k - pad).
    i_idx = jnp.arange(L1)[:, None]
    t_idx = jnp.arange(L2)[None, :]
    S = jnp.stack([(i_idx == (t_idx + k - pad)).astype(f32) for k in range(K)], axis=0)
    T = jnp.einsum("kij,ab->kaibj", S, jnp.eye(B, dtype=f32)).reshape(K, BL1, BL2)

    fcw_tiled = jnp.tile(fcw.reshape(C, L2).astype(f32), (1, B))            # (C, B*L2)
    Sel = jnp.repeat(jnp.eye(B, dtype=f32), L2, axis=0)                     # (B*L2, B)
    fcb1 = fcb.reshape(1).astype(f32)

    vmem = pl.BlockSpec(memory_space=pltpu.MemorySpace.VMEM)
    smem = pl.BlockSpec(memory_space=pltpu.MemorySpace.SMEM)

    out = pl.pallas_call(
        tcn_kernel,
        out_shape=jax.ShapeDtypeStruct((1, B), f32),
        in_specs=[vmem, vmem, vmem, vmem, vmem, vmem, vmem, vmem, smem],
        out_specs=vmem,
    )(X1, W1, b1c, W2, b2c, T, fcw_tiled, Sel, fcb1)

    return out.reshape(B, 1)


def tcn_reference(x, params, kernel_size):
    """Pure-JAX reference matching PyTorch semantics (dropout in eval mode)."""
    w1, b1, w2, b2, fcw, fcb = params
    pad = kernel_size - 1

    def conv1d(z, w, b):
        y = jax.lax.conv_general_dilated(
            z, w, window_strides=(1,), padding=[(pad, pad)],
            dimension_numbers=("NCH", "OIH", "NCH"))
        return y + b[None, :, None]

    y = jnp.maximum(conv1d(x, w1, b1), 0.0)
    y = jnp.maximum(conv1d(y, w2, b2), 0.0)
    y = y.reshape(y.shape[0], -1)
    return y @ fcw.T + fcb


if __name__ == "__main__":
    # Small shapes consistent with the module:
    #   num_inputs=4, num_channels=8, kernel_size=3, seq len L=16, batch B=2
    B, Cin, L = 2, 4, 16
    C, K = 8, 3
    L2 = L + 2 * (K - 1)
    conv_output_size = C * L2               # matches _calculate_conv_output_shape

    key = jax.random.PRNGKey(0)
    ks = jax.random.split(key, 7)
    x = jax.random.normal(ks[0], (B, Cin, L), jnp.float32)

    # Deterministic synthetic parameters (shapes from the module's __init__).
    w1 = 0.3 * jax.random.normal(ks[1], (C, Cin, K), jnp.float32)
    b1 = 0.1 * jax.random.normal(ks[2], (C,), jnp.float32)
    w2 = 0.2 * jax.random.normal(ks[3], (C, C, K), jnp.float32)
    b2 = 0.1 * jax.random.normal(ks[4], (C,), jnp.float32)
    fcw = 0.1 * jax.random.normal(ks[5], (1, conv_output_size), jnp.float32)
    fcb = 0.1 * jax.random.normal(ks[6], (1,), jnp.float32)
    params = (w1, b1, w2, b2, fcw, fcb)

    out = jax.block_until_ready(tcn_forward(x, params, K))
    ref = tcn_reference(x, params, K)

    assert out.shape == (B, 1), out.shape
    assert jnp.allclose(out, ref, rtol=1e-4, atol=1e-4), (out, ref)

    print("KERNEL_OK")
</pallas_src>

<mosaic_0001>
module attributes {stable_mosaic.version = 11 : i64} {
  func.func @tcn_kernel(%arg0: memref<12x36xf32, #tpu.memory_space<vmem>>, %arg1: memref<8x12xf32, #tpu.memory_space<vmem>>, %arg2: memref<8x1xf32, #tpu.memory_space<vmem>>, %arg3: memref<8x24xf32, #tpu.memory_space<vmem>>, %arg4: memref<8x1xf32, #tpu.memory_space<vmem>>, %arg5: memref<3x36x40xf32, #tpu.memory_space<vmem>>, %arg6: memref<8x40xf32, #tpu.memory_space<vmem>>, %arg7: memref<40x2xf32, #tpu.memory_space<vmem>>, %arg8: memref<1xf32, #tpu.memory_space<smem>>, %arg9: memref<1x2xf32, #tpu.memory_space<vmem>>) attributes {dimension_semantics = [], scalar_prefetch = 0 : i64, scratch_operands = 0 : i64, tpu.core_type = #tpu.core_type<tc>} {
    %c0 = arith.constant 0 : index
    %c0_0 = arith.constant 0 : index
    %0 = vector.load %arg1[%c0, %c0_0] : memref<8x12xf32, #tpu.memory_space<vmem>>, vector<8x12xf32>
    %c0_1 = arith.constant 0 : index
    %c0_2 = arith.constant 0 : index
    %1 = vector.load %arg0[%c0_1, %c0_2] : memref<12x36xf32, #tpu.memory_space<vmem>>, vector<12x36xf32>
    %cst = arith.constant dense<0.000000e+00> : vector<8x36xf32>
    %2 = tpu.matmul %0, %1, %cst {dimension_numbers = #tpu.dot_dimension_numbers<[1], [0], [0], [1], [0, 0, 1, 1], [], []>} : vector<8x12xf32>, vector<12x36xf32>, vector<8x36xf32> -> vector<8x36xf32>
    %c0_3 = arith.constant 0 : index
    %c0_4 = arith.constant 0 : index
    %3 = vector.load %arg2[%c0_3, %c0_4] : memref<8x1xf32, #tpu.memory_space<vmem>>, vector<8x1xf32>
    %4 = vector.broadcast %3 : vector<8x1xf32> to vector<8x36xf32>
    %5 = arith.addf %2, %4 : vector<8x36xf32>
    %cst_5 = arith.constant 0.000000e+00 : f32
    %6 = vector.broadcast %cst_5 : f32 to vector<8x36xf32>
    %7 = arith.maximumf %5, %6 : vector<8x36xf32>
    %c0_6 = arith.constant 0 : index
    %c0_7 = arith.constant 0 : index
    %c0_8 = arith.constant 0 : index
    %8 = vector.load %arg5[%c0_6, %c0_7, %c0_8] : memref<3x36x40xf32, #tpu.memory_space<vmem>>, vector<1x36x40xf32>
    %9 = vector.shape_cast %8 : vector<1x36x40xf32> to vector<36x40xf32>
    %cst_9 = arith.constant dense<0.000000e+00> : vector<8x40xf32>
    %10 = tpu.matmul %7, %9, %cst_9 {dimension_numbers = #tpu.dot_dimension_numbers<[1], [0], [0], [1], [0, 0, 1, 1], [], []>} : vector<8x36xf32>, vector<36x40xf32>, vector<8x40xf32> -> vector<8x40xf32>
    %c1 = arith.constant 1 : index
    %c0_10 = arith.constant 0 : index
    %c0_11 = arith.constant 0 : index
    %11 = vector.load %arg5[%c1, %c0_10, %c0_11] : memref<3x36x40xf32, #tpu.memory_space<vmem>>, vector<1x36x40xf32>
    %12 = vector.shape_cast %11 : vector<1x36x40xf32> to vector<36x40xf32>
    %cst_12 = arith.constant dense<0.000000e+00> : vector<8x40xf32>
    %13 = tpu.matmul %7, %12, %cst_12 {dimension_numbers = #tpu.dot_dimension_numbers<[1], [0], [0], [1], [0, 0, 1, 1], [], []>} : vector<8x36xf32>, vector<36x40xf32>, vector<8x40xf32> -> vector<8x40xf32>
    %c2 = arith.constant 2 : index
    %c0_13 = arith.constant 0 : index
    %c0_14 = arith.constant 0 : index
    %14 = vector.load %arg5[%c2, %c0_13, %c0_14] : memref<3x36x40xf32, #tpu.memory_space<vmem>>, vector<1x36x40xf32>
    %15 = vector.shape_cast %14 : vector<1x36x40xf32> to vector<36x40xf32>
    %cst_15 = arith.constant dense<0.000000e+00> : vector<8x40xf32>
    %16 = tpu.matmul %7, %15, %cst_15 {dimension_numbers = #tpu.dot_dimension_numbers<[1], [0], [0], [1], [0, 0, 1, 1], [], []>} : vector<8x36xf32>, vector<36x40xf32>, vector<8x40xf32> -> vector<8x40xf32>
    %17 = tpu.concatenate %10, %13, %16 in 0 : vector<8x40xf32>, vector<8x40xf32>, vector<8x40xf32> -> vector<24x40xf32>
    %c0_16 = arith.constant 0 : index
    %c0_17 = arith.constant 0 : index
    %18 = vector.load %arg3[%c0_16, %c0_17] : memref<8x24xf32, #tpu.memory_space<vmem>>, vector<8x24xf32>
    %cst_18 = arith.constant dense<0.000000e+00> : vector<8x40xf32>
    %19 = tpu.matmul %18, %17, %cst_18 {dimension_numbers = #tpu.dot_dimension_numbers<[1], [0], [0], [1], [0, 0, 1, 1], [], []>} : vector<8x24xf32>, vector<24x40xf32>, vector<8x40xf32> -> vector<8x40xf32>
    %c0_19 = arith.constant 0 : index
    %c0_20 = arith.constant 0 : index
    %20 = vector.load %arg4[%c0_19, %c0_20] : memref<8x1xf32, #tpu.memory_space<vmem>>, vector<8x1xf32>
    %21 = vector.broadcast %20 : vector<8x1xf32> to vector<8x40xf32>
    %22 = arith.addf %19, %21 : vector<8x40xf32>
    %cst_21 = arith.constant 0.000000e+00 : f32
    %23 = vector.broadcast %cst_21 : f32 to vector<8x40xf32>
    %24 = arith.maximumf %22, %23 : vector<8x40xf32>
    %c0_22 = arith.constant 0 : index
    %c0_23 = arith.constant 0 : index
    %25 = vector.load %arg6[%c0_22, %c0_23] : memref<8x40xf32, #tpu.memory_space<vmem>>, vector<8x40xf32>
    %26 = arith.mulf %24, %25 : vector<8x40xf32>
    %c0_24 = arith.constant 0 : index
    %c0_25 = arith.constant 0 : index
    %27 = vector.load %arg7[%c0_24, %c0_25] : memref<40x2xf32, #tpu.memory_space<vmem>>, vector<40x2xf32>
    %cst_26 = arith.constant dense<0.000000e+00> : vector<8x2xf32>
    %28 = tpu.matmul %26, %27, %cst_26 {dimension_numbers = #tpu.dot_dimension_numbers<[1], [0], [0], [1], [0, 0, 1, 1], [], []>} : vector<8x40xf32>, vector<40x2xf32>, vector<8x2xf32> -> vector<8x2xf32>
    %cst_27 = arith.constant dense<0.000000e+00> : vector<2xf32>
    %29 = vector.multi_reduction <add>, %28, %cst_27 [0] : vector<8x2xf32> to vector<2xf32>
    %30 = vector.shape_cast %29 : vector<2xf32> to vector<1x2xf32>
    %c0_28 = arith.constant 0 : index
    %31 = memref.load %arg8[%c0_28] : memref<1xf32, #tpu.memory_space<smem>>
    %32 = vector.broadcast %31 : f32 to vector<1x2xf32>
    %33 = arith.addf %30, %32 : vector<1x2xf32>
    %c0_29 = arith.constant 0 : index
    %c0_30 = arith.constant 0 : index
    %34 = vector.load %arg9[%c0_29, %c0_30] : memref<1x2xf32, #tpu.memory_space<vmem>>, vector<1x2xf32>
    tpu.vector_store %arg9[%c0_29, %c0_30], %33 {strides = array<i32>} : memref<1x2xf32, #tpu.memory_space<vmem>>, vector<1x2xf32>,
    return
  }
}

</mosaic_0001>

<llo_original>
// kernel: tile.7
$region0: #{tile.7}
  %s0 = inlined_call_operand.vmem [shape: f32[8,2,20], index: 0, kind: input, shape index: {}]
  %s1 = inlined_call_operand.vmem [shape: f32[8,40], index: 1, kind: output, shape index: {}]
  $region1: #{tile.7} parent=0
    #allocation0 [shape = 'u8[32768]{0}', space=vmem, size = 0x8000, scoped, tag = 'scoped mem for input reshape']
    %s3 = sshllo.u32 0, 2
    %s4 = smul.addr 2, 7
    %s5 = scalar_lea.vmem %s0, %s4
    %v6 = vld [vmem:[%s5] sm:%s3]
    %s7 = scalar_lea.vmem [#allocation0], 56
    %8 = vst [vmem:[%s7] sm:%s3] %v6
    %s9 = smul.addr 2, 6
    %s10 = scalar_lea.vmem %s0, %s9
    %v11 = vld [vmem:[%s10] sm:%s3]
    %s12 = scalar_lea.vmem [#allocation0], 48
    %13 = vst [vmem:[%s12] sm:%s3] %v11
    %s14 = smul.addr 2, 5
    %s15 = scalar_lea.vmem %s0, %s14
    %v16 = vld [vmem:[%s15] sm:%s3]
    %s17 = scalar_lea.vmem [#allocation0], 40
    %18 = vst [vmem:[%s17] sm:%s3] %v16
    %s19 = smul.addr 2, 4
    %s20 = scalar_lea.vmem %s0, %s19
    %v21 = vld [vmem:[%s20] sm:%s3]
    %s22 = scalar_lea.vmem [#allocation0], 32
    %23 = vst [vmem:[%s22] sm:%s3] %v21
    %s24 = smul.addr 2, 3
    %s25 = scalar_lea.vmem %s0, %s24
    %v26 = vld [vmem:[%s25] sm:%s3]
    %s27 = scalar_lea.vmem [#allocation0], 24
    %28 = vst [vmem:[%s27] sm:%s3] %v26
    %s29 = smul.addr 2, 2
    %s30 = scalar_lea.vmem %s0, %s29
    %v31 = vld [vmem:[%s30] sm:%s3]
    %s32 = scalar_lea.vmem [#allocation0], 16
    %33 = vst [vmem:[%s32] sm:%s3] %v31
    %s34 = scalar_lea.vmem %s0, 2
    %v35 = vld [vmem:[%s34] sm:%s3]
    %s36 = scalar_lea.vmem [#allocation0], 8
    %37 = vst [vmem:[%s36] sm:%s3] %v35
    %v38 = vld [vmem:[%s0] sm:%s3]
    %39 = vst [vmem:[#allocation0] sm:%s3] %v38
    %v40 = vld [vmem:[#allocation0] ss:$8 sm:$0xf]
    %v41 = vld [vmem:[#allocation0] ss:$8 sm:$0xf0]
    %vm42 = vcmask 1047556
    %v43 = vsel %vm42, %v41, %v40
    %vm44 = vcmask 162816
    %45 = vst.msk [vmem:[%s1] sm:$0xff] %vm44, %v43
    %s46 = scalar_lea.vmem [#allocation0], 1
    %v47 = vld [vmem:[%s46] ss:$8 sm:$0xf]
    %s48 = scalar_lea.vmem [#allocation0], 1
    %v49 = vld [vmem:[%s48] ss:$8 sm:$0xf0]
    %vm50 = vcmask 1047556
    %v51 = vsel %vm50, %v49, %v47
    %52 = vrot.lane.b32.xlu0 %v51, 20
    %v53 = vpop.permute.xlu0 %52
    %vm54 = vcmask 326816
    %55 = vst.msk [vmem:[%s1] sm:$0xff] %vm54, %v53

// kernel: tcn_forward.1
$region0: #{tcn_forward.1}
  #allocation0 [shape = 'u32[]', space=smem, size = 0x4, offset = 0x4, fixed_abs, tag = 'smem constant byte address 0x4 - core index']
  #allocation1 [shape = 'u32[144,128]{1,0:T(1,128)}', space=vmem, size = 0x12000, scoped, tag = 'internal scratch']
  #allocation2 [shape = 'f32[1]{0:T(128)S(6)}', space=smem, size = 0x200, scoped, tag = 'scoped memory for tcn_forward.1']
  %s0 = inlined_call_operand.vmem [shape: f32[12,36], index: 0, kind: input, shape index: {}]
  %s1 = inlined_call_operand.vmem [shape: f32[8,12], index: 1, kind: input, shape index: {}]
  %s2 = inlined_call_operand.vmem [shape: f32[8,1], index: 2, kind: input, shape index: {}]
  %s3 = inlined_call_operand.vmem [shape: f32[8,24], index: 3, kind: input, shape index: {}]
  %s4 = inlined_call_operand.vmem [shape: f32[8,1], index: 4, kind: input, shape index: {}]
  %s5 = inlined_call_operand.vmem [shape: f32[3,36,40], index: 5, kind: input, shape index: {}]
  %s6 = inlined_call_operand.vmem [shape: f32[8,40], index: 6, kind: input, shape index: {}]
  %s7 = inlined_call_operand.vmem [shape: f32[40,2], index: 7, kind: input, shape index: {}]
  %s8 = inlined_call_operand.<no memory space> [shape: f32[1], index: 8, kind: input, shape index: {}]
  %s9 = inlined_call_operand.hbm [shape: f32[1,2], index: 9, kind: output, shape index: {}]
  %s10 = sld [smem:[#allocation0]]
  $region46: #{tcn_forward.1} parent=0
    _
  %s12 = ssub.s32 1, %s10
  %s13 = scalar_select 0, %s12, %s10
  %14 = sst [smem:[#allocation2]] %s8
  $region1: #{tcn_forward.1} parent=0
    #allocation3 [shape = 'u8[512]{0}', space=vmem, size = 0x400, scoped, tag = 'output window, operand 0, single buffered']
    #allocation4 [shape = 's32[1]{0}', space=sflag, size = 0x4, scoped, tag = 'scoped memory for tcn_forward.1']
    %15 = vsyncpa [#allocation4], 0
    // Predicated region
    $region2: #{tcn_forward.1} parent=1 // pred_check
      _
    $region3: #{tcn_forward.1} parent=1 // pred_check_branch
      %17 = sbr.rel (0) target = $region5
    $region4: #{tcn_forward.1} parent=1 // pred_region
      _
    $region5: #{tcn_forward.1} parent=1 // pred_fallthru
      _
    // Predicated region
    $region6: #{tcn_forward.1} parent=1 // pred_check
      _
    $region7: #{tcn_forward.1} parent=1 // pred_check_branch
      %19 = sbr.rel (0) target = $region9
    $region8: #{tcn_forward.1} parent=1 // pred_region
      _
    $region9: #{tcn_forward.1} parent=1 // pred_fallthru
      _
    // Predicated region
    $region10: #{tcn_forward.1} parent=1 // pred_check
      _
    $region11: #{tcn_forward.1} parent=1 // pred_check_branch
      %21 = sbr.rel (0) target = $region13
    $region12: #{tcn_forward.1} parent=1 // pred_region
      _
    $region13: #{tcn_forward.1} parent=1 // pred_fallthru
      _
    // Predicated region
    $region14: #{tcn_forward.1} parent=1 // pred_check
      _
    $region15: #{tcn_forward.1} parent=1 // pred_check_branch
      %23 = sbr.rel (0) target = $region17
    $region16: #{tcn_forward.1} parent=1 // pred_region
      _
    $region17: #{tcn_forward.1} parent=1 // pred_fallthru
      _
    // Predicated region
    $region18: #{tcn_forward.1} parent=1 // pred_check
      _
    $region19: #{tcn_forward.1} parent=1 // pred_check_branch
      %25 = sbr.rel (0) target = $region21
    $region20: #{tcn_forward.1} parent=1 // pred_region
      _
    $region21: #{tcn_forward.1} parent=1 // pred_fallthru
      _
    // Predicated region
    $region22: #{tcn_forward.1} parent=1 // pred_check
      _
    $region23: #{tcn_forward.1} parent=1 // pred_check_branch
      %27 = sbr.rel (0) target = $region25
    $region24: #{tcn_forward.1} parent=1 // pred_region
      _
    $region25: #{tcn_forward.1} parent=1 // pred_fallthru
      _
    // Predicated region
    $region26: #{tcn_forward.1} parent=1 // pred_check
      _
    $region27: #{tcn_forward.1} parent=1 // pred_check_branch
      %29 = sbr.rel (0) target = $region29
    $region28: #{tcn_forward.1} parent=1 // pred_region
      _
    $region29: #{tcn_forward.1} parent=1 // pred_fallthru
      _
    // Predicated region
    $region30: #{tcn_forward.1} parent=1 // pred_check
      _
    $region31: #{tcn_forward.1} parent=1 // pred_check_branch
      %31 = sbr.rel (0) target = $region33
    $region32: #{tcn_forward.1} parent=1 // pred_region
      _
    $region33: #{tcn_forward.1} parent=1 // pred_fallthru
      _
    // Predicated region
    $region34: #{tcn_forward.1} parent=1 // pred_check
      _
    $region35: #{tcn_forward.1} parent=1 // pred_check_branch
      %33 = sbr.rel (0) target = $region37
    $region36: #{tcn_forward.1} parent=1 // pred_region
      _
    $region37: #{tcn_forward.1} parent=1 // pred_fallthru
      _
    %v34 = vld [vmem:[%s1] sm:$0xff]
    %v35 = vld [vmem:[%s0] sm:$0xff]
    %v36 = vld [vmem:[%s0 + $0x8] sm:$0xf]
    %v37 = vld [vmem:[%s2] sm:$0xff]
    %39 = vset.pattern.permute.xlu0 0
    %40 = vperm.xlu0 %39, %v37
    %v41 = vpop.permute.xlu0 %40
    %vm43 = vcmask 97280
    %v45 = vsel %vm43, %v34, 0
    %vm47 = vcmask 1043456
    %v49 = vsel %vm47, %v36, 0
    %51 = vmatprep.subr.mxu0 0.0
    %52 = vmatpush1.msra.mxu0 %v35
    %53 = vmatprep.subr.mxu0 0.0
    %54 = vmatpush1.msra.mxu0 %v49
    %55 = vmatprep.subr.mxu0 0.0
    %56 = vmatpush1.msra.mxu0 0.0
    %57 = vmatprep.subr.mxu0 0.0
    %58 = vmatpush1.msra.mxu0 0.0
    %59 = vmatprep.subr.mxu0 0.0
    %60 = vmatpush1.msra.mxu0 0.0
    %61 = vmatprep.subr.mxu0 0.0
    %62 = vmatpush1.msra.mxu0 0.0
    %63 = vmatprep.subr.mxu0 0.0
    %64 = vmatpush1.msra.mxu0 0.0
    %65 = vmatprep.subr.mxu0 0.0
    %66 = vmatpush1.msra.mxu0 0.0
    %67 = vmatprep.subr.mxu0 0.0
    %68 = vmatpush1.msra.mxu0 0.0
    %69 = vmatprep.subr.mxu0 0.0
    %70 = vmatpush1.msra.mxu0 0.0
    %71 = vmatprep.subr.mxu0 0.0
    %72 = vmatpush1.msra.mxu0 0.0
    %73 = vmatprep.subr.mxu0 0.0
    %74 = vmatpush1.msra.mxu0 0.0
    %75 = vmatprep.subr.mxu0 0.0
    %76 = vmatpush1.msra.mxu0 0.0
    %77 = vmatprep.subr.mxu0 0.0
    %78 = vmatpush1.msra.mxu0 0.0
    %79 = vmatprep.subr.mxu0 0.0
    %80 = vmatpush1.msra.mxu0 0.0
    %81 = vmatprep.subr.mxu0 0.0
    %82 = vmatpush1.msra.mxu0 0.0
    %83 = vmatprep.subr.mxu0 0.0
    %84 = vmatpush1.msra.mxu0 0.0
    %85 = vmatprep.subr.mxu0 0.0
    %86 = vmatpush1.msra.mxu0 0.0
    %87 = vmatprep.subr.mxu0 0.0
    %88 = vmatpush1.msra.mxu0 0.0
    %89 = vmatprep.subr.mxu0 0.0
    %90 = vmatpush1.msra.mxu0 0.0
    %91 = vmatprep.subr.mxu0 0.0
    %92 = vmatpush1.msra.mxu0 0.0
    %93 = vmatprep.subr.mxu0 0.0
    %94 = vmatpush1.msra.mxu0 0.0
    %95 = vmatprep.subr.mxu0 0.0
    %96 = vmatpush1.msra.mxu0 0.0
    %97 = vmatprep.subr.mxu0 0.0
    %98 = vmatpush1.msra.mxu0 0.0
    %99 = vmatprep.subr.mxu0 0.0
    %100 = vmatpush1.msra.mxu0 0.0
    %101 = vmatprep.subr.mxu0 0.0
    %102 = vmatpush1.msra.mxu0 0.0
    %103 = vmatprep.subr.mxu0 0.0
    %104 = vmatpush1.msra.mxu0 0.0
    %105 = vmatprep.subr.mxu0 0.0
    %106 = vmatpush1.msra.mxu0 0.0
    %107 = vmatprep.subr.mxu0 0.0
    %108 = vmatpush1.msra.mxu0 0.0
    %109 = vmatprep.subr.mxu0 0.0
    %110 = vmatpush1.msra.mxu0 0.0
    %111 = vmatprep.subr.mxu0 0.0
    %112 = vmatpush1.msra.mxu0 0.0
    %113 = vmatprep.subr.mxu0 0.0
    %114 = vmatpush1.msra.mxu0 0.0
    %115 = vmatprep.mubr.f32.mxu0 0.0
    %116 = vmatmul.mubr.f32.gmra.mrb[0].mxu0 %v45
    %v117 = vpop.f32.mrb[0].mxu0
    %v118 = vadd.f32 %v41, %v117
    %v119 = vpop.f32.mrb[0].mxu0
    %120 = vdwg.mxu0
    %v121 = vmax.f32 %v118, 0.0
    %v122 = vld [vmem:[%s5] sm:$0xff]
    %v123 = vld [vmem:[%s5 + $0x8] sm:$0xff]
    %v124 = vld [vmem:[%s5 + $0x10] sm:$0xff]
    %v125 = vld [vmem:[%s5 + $0x18] sm:$0xff]
    %v126 = vld [vmem:[%s5 + $0x20] sm:$0xf]
    %vm127 = vcmask 293888
    %v129 = vsel %vm127, %v121, 0
    %v132 = vsel %vm47, %v126, 0
    %134 = vmatprep.subr.mxu0 0.0
    %135 = vmatpush1.msra.mxu0 %v122
    %136 = vmatprep.subr.mxu0 0.0
    %137 = vmatpush1.msra.mxu0 %v123
    %138 = vmatprep.subr.mxu0 0.0
    %139 = vmatpush1.msra.mxu0 %v124
    %140 = vmatprep.subr.mxu0 0.0
    %141 = vmatpush1.msra.mxu0 %v125
    %142 = vmatprep.subr.mxu0 0.0
    %143 = vmatpush1.msra.mxu0 %v132
    %144 = vmatprep.subr.mxu0 0.0
    %145 = vmatpush1.msra.mxu0 0.0
    %146 = vmatprep.subr.mxu0 0.0
    %147 = vmatpush1.msra.mxu0 0.0
    %148 = vmatprep.subr.mxu0 0.0
    %149 = vmatpush1.msra.mxu0 0.0
    %150 = vmatprep.subr.mxu0 0.0
    %151 = vmatpush1.msra.mxu0 0.0
    %152 = vmatprep.subr.mxu0 0.0
    %153 = vmatpush1.msra.mxu0 0.0
    %154 = vmatprep.subr.mxu0 0.0
    %155 = vmatpush1.msra.mxu0 0.0
    %156 = vmatprep.subr.mxu0 0.0
    %157 = vmatpush1.msra.mxu0 0.0
    %158 = vmatprep.subr.mxu0 0.0
    %159 = vmatpush1.msra.mxu0 0.0
    %160 = vmatprep.subr.mxu0 0.0
    %161 = vmatpush1.msra.mxu0 0.0
    %162 = vmatprep.subr.mxu0 0.0
    %163 = vmatpush1.msra.mxu0 0.0
    %164 = vmatprep.subr.mxu0 0.0
    %165 = vmatpush1.msra.mxu0 0.0
    %166 = vmatprep.subr.mxu0 0.0
    %167 = vmatpush1.msra.mxu0 0.0
    %168 = vmatprep.subr.mxu0 0.0
    %169 = vmatpush1.msra.mxu0 0.0
    %170 = vmatprep.subr.mxu0 0.0
    %171 = vmatpush1.msra.mxu0 0.0
    %172 = vmatprep.subr.mxu0 0.0
    %173 = vmatpush1.msra.mxu0 0.0
    %174 = vmatprep.subr.mxu0 0.0
    %175 = vmatpush1.msra.mxu0 0.0
    %176 = vmatprep.subr.mxu0 0.0
    %177 = vmatpush1.msra.mxu0 0.0
    %178 = vmatprep.subr.mxu0 0.0
    %179 = vmatpush1.msra.mxu0 0.0
    %180 = vmatprep.subr.mxu0 0.0
    %181 = vmatpush1.msra.mxu0 0.0
    %182 = vmatprep.subr.mxu0 0.0
    %183 = vmatpush1.msra.mxu0 0.0
    %184 = vmatprep.subr.mxu0 0.0
    %185 = vmatpush1.msra.mxu0 0.0
    %186 = vmatprep.subr.mxu0 0.0
    %187 = vmatpush1.msra.mxu0 0.0
    %188 = vmatprep.subr.mxu0 0.0
    %189 = vmatpush1.msra.mxu0 0.0
    %190 = vmatprep.subr.mxu0 0.0
    %191 = vmatpush1.msra.mxu0 0.0
    %192 = vmatprep.subr.mxu0 0.0
    %193 = vmatpush1.msra.mxu0 0.0
    %194 = vmatprep.subr.mxu0 0.0
    %195 = vmatpush1.msra.mxu0 0.0
    %196 = vmatprep.subr.mxu0 0.0
    %197 = vmatpush1.msra.mxu0 0.0
    %198 = vmatprep.mubr.f32.mxu0 0.0
    %199 = vmatmul.mubr.f32.gmra.mrb[0].mxu0 %v129
    %v200 = vpop.f32.mrb[0].mxu0
    %v201 = vadd.f32 0.0, %v200
    %v202 = vpop.f32.mrb[0].mxu0
    %203 = vdwg.mxu0
    %s204 = scalar_lea.vmem %s5, 40
    %v205 = vld [vmem:[%s204] sm:$0xff]
    %v206 = vld [vmem:[%s204 + $0x8] sm:$0xff]
    %v207 = vld [vmem:[%s204 + $0x10] sm:$0xff]
    %v208 = vld [vmem:[%s204 + $0x18] sm:$0xff]
    %v209 = vld [vmem:[%s204 + $0x20] sm:$0xf]
    %v211 = vsel %vm47, %v209, 0
    %213 = vmatprep.subr.mxu0 0.0
    %214 = vmatpush1.msra.mxu0 %v205
    %215 = vmatprep.subr.mxu0 0.0
    %216 = vmatpush1.msra.mxu0 %v206
    %217 = vmatprep.subr.mxu0 0.0
    %218 = vmatpush1.msra.mxu0 %v207
    %219 = vmatprep.subr.mxu0 0.0
    %220 = vmatpush1.msra.mxu0 %v208
    %221 = vmatprep.subr.mxu0 0.0
    %222 = vmatpush1.msra.mxu0 %v211
    %223 = vmatprep.subr.mxu0 0.0
    %224 = vmatpush1.msra.mxu0 0.0
    %225 = vmatprep.subr.mxu0 0.0
    %226 = vmatpush1.msra.mxu0 0.0
    %227 = vmatprep.subr.mxu0 0.0
    %228 = vmatpush1.msra.mxu0 0.0
    %229 = vmatprep.subr.mxu0 0.0
    %230 = vmatpush1.msra.mxu0 0.0
    %231 = vmatprep.subr.mxu0 0.0
    %232 = vmatpush1.msra.mxu0 0.0
    %233 = vmatprep.subr.mxu0 0.0
    %234 = vmatpush1.msra.mxu0 0.0
    %235 = vmatprep.subr.mxu0 0.0
    %236 = vmatpush1.msra.mxu0 0.0
    %237 = vmatprep.subr.mxu0 0.0
    %238 = vmatpush1.msra.mxu0 0.0
    %239 = vmatprep.subr.mxu0 0.0
    %240 = vmatpush1.msra.mxu0 0.0
    %241 = vmatprep.subr.mxu0 0.0
    %242 = vmatpush1.msra.mxu0 0.0
    %243 = vmatprep.subr.mxu0 0.0
    %244 = vmatpush1.msra.mxu0 0.0
    %245 = vmatprep.subr.mxu0 0.0
    %246 = vmatpush1.msra.mxu0 0.0
    %247 = vmatprep.subr.mxu0 0.0
    %248 = vmatpush1.msra.mxu0 0.0
    %249 = vmatprep.subr.mxu0 0.0
    %250 = vmatpush1.msra.mxu0 0.0
    %251 = vmatprep.subr.mxu0 0.0
    %252 = vmatpush1.msra.mxu0 0.0
    %253 = vmatprep.subr.mxu0 0.0
    %254 = vmatpush1.msra.mxu0 0.0
    %255 = vmatprep.subr.mxu0 0.0
    %256 = vmatpush1.msra.mxu0 0.0
    %257 = vmatprep.subr.mxu0 0.0
    %258 = vmatpush1.msra.mxu0 0.0
    %259 = vmatprep.subr.mxu0 0.0
    %260 = vmatpush1.msra.mxu0 0.0
    %261 = vmatprep.subr.mxu0 0.0
    %262 = vmatpush1.msra.mxu0 0.0
    %263 = vmatprep.subr.mxu0 0.0
    %264 = vmatpush1.msra.mxu0 0.0
    %265 = vmatprep.subr.mxu0 0.0
    %266 = vmatpush1.msra.mxu0 0.0
    %267 = vmatprep.subr.mxu0 0.0
    %268 = vmatpush1.msra.mxu0 0.0
    %269 = vmatprep.subr.mxu0 0.0
    %270 = vmatpush1.msra.mxu0 0.0
    %271 = vmatprep.subr.mxu0 0.0
    %272 = vmatpush1.msra.mxu0 0.0
    %273 = vmatprep.subr.mxu0 0.0
    %274 = vmatpush1.msra.mxu0 0.0
    %275 = vmatprep.subr.mxu0 0.0
    %276 = vmatpush1.msra.mxu0 0.0
    %277 = vmatprep.mubr.f32.mxu0 0.0
    %278 = vmatmul.mubr.f32.gmra.mrb[0].mxu0 %v129
    %v279 = vpop.f32.mrb[0].mxu0
    %v280 = vadd.f32 0.0, %v279
    %v281 = vpop.f32.mrb[0].mxu0
    %282 = vdwg.mxu0
    %s283 = scalar_lea.vmem %s5, 80
    %v284 = vld [vmem:[%s283] sm:$0xff]
    %v285 = vld [vmem:[%s283 + $0x8] sm:$0xff]
    %v286 = vld [vmem:[%s283 + $0x10] sm:$0xff]
    %v287 = vld [vmem:[%s283 + $0x18] sm:$0xff]
    %v288 = vld [vmem:[%s283 + $0x20] sm:$0xf]
    %v290 = vsel %vm47, %v288, 0
    %292 = vmatprep.subr.mxu0 0.0
    %293 = vmatpush1.msra.mxu0 %v284
    %294 = vmatprep.subr.mxu0 0.0
    %295 = vmatpush1.msra.mxu0 %v285
    %296 = vmatprep.subr.mxu0 0.0
    %297 = vmatpush1.msra.mxu0 %v286
    %298 = vmatprep.subr.mxu0 0.0
    %299 = vmatpush1.msra.mxu0 %v287
    %300 = vmatprep.subr.mxu0 0.0
    %301 = vmatpush1.msra.mxu0 %v290
    %302 = vmatprep.subr.mxu0 0.0
    %303 = vmatpush1.msra.mxu0 0.0
    %304 = vmatprep.subr.mxu0 0.0
    %305 = vmatpush1.msra.mxu0 0.0
    %306 = vmatprep.subr.mxu0 0.0
    %307 = vmatpush1.msra.mxu0 0.0
    %308 = vmatprep.subr.mxu0 0.0
    %309 = vmatpush1.msra.mxu0 0.0
    %310 = vmatprep.subr.mxu0 0.0
    %311 = vmatpush1.msra.mxu0 0.0
    %312 = vmatprep.subr.mxu0 0.0
    %313 = vmatpush1.msra.mxu0 0.0
    %314 = vmatprep.subr.mxu0 0.0
    %315 = vmatpush1.msra.mxu0 0.0
    %316 = vmatprep.subr.mxu0 0.0
    %317 = vmatpush1.msra.mxu0 0.0
    %318 = vmatprep.subr.mxu0 0.0
    %319 = vmatpush1.msra.mxu0 0.0
    %320 = vmatprep.subr.mxu0 0.0
    %321 = vmatpush1.msra.mxu0 0.0
    %322 = vmatprep.subr.mxu0 0.0
    %323 = vmatpush1.msra.mxu0 0.0
    %324 = vmatprep.subr.mxu0 0.0
    %325 = vmatpush1.msra.mxu0 0.0
    %326 = vmatprep.subr.mxu0 0.0
    %327 = vmatpush1.msra.mxu0 0.0
    %328 = vmatprep.subr.mxu0 0.0
    %329 = vmatpush1.msra.mxu0 0.0
    %330 = vmatprep.subr.mxu0 0.0
    %331 = vmatpush1.msra.mxu0 0.0
    %332 = vmatprep.subr.mxu0 0.0
    %333 = vmatpush1.msra.mxu0 0.0
    %334 = vmatprep.subr.mxu0 0.0
    %335 = vmatpush1.msra.mxu0 0.0
    %336 = vmatprep.subr.mxu0 0.0
    %337 = vmatpush1.msra.mxu0 0.0
    %338 = vmatprep.subr.mxu0 0.0
    %339 = vmatpush1.msra.mxu0 0.0
    %340 = vmatprep.subr.mxu0 0.0
    %341 = vmatpush1.msra.mxu0 0.0
    %342 = vmatprep.subr.mxu0 0.0
    %343 = vmatpush1.msra.mxu0 0.0
    %344 = vmatprep.subr.mxu0 0.0
    %345 = vmatpush1.msra.mxu0 0.0
    %346 = vmatprep.subr.mxu0 0.0
    %347 = vmatpush1.msra.mxu0 0.0
    %348 = vmatprep.subr.mxu0 0.0
    %349 = vmatpush1.msra.mxu0 0.0
    %350 = vmatprep.subr.mxu0 0.0
    %351 = vmatpush1.msra.mxu0 0.0
    %352 = vmatprep.subr.mxu0 0.0
    %353 = vmatpush1.msra.mxu0 0.0
    %354 = vmatprep.subr.mxu0 0.0
    %355 = vmatpush1.msra.mxu0 0.0
    %356 = vmatprep.mubr.f32.mxu0 0.0
    %357 = vmatmul.mubr.f32.gmra.mrb[0].mxu0 %v129
    %v358 = vpop.f32.mrb[0].mxu0
    %v359 = vadd.f32 0.0, %v358
    %v360 = vpop.f32.mrb[0].mxu0
    %361 = vdwg.mxu0
    %v362 = vld [vmem:[%s3] sm:$0xff]
    %v363 = vld [vmem:[%s4] sm:$0xff]
    %365 = vset.pattern.permute.xlu0 0
    %366 = vperm.xlu0 %365, %v363
    %v367 = vpop.permute.xlu0 %366
    %vm369 = vcmask 195584
    %v371 = vsel %vm369, %v362, 0
    %373 = vmatprep.subr.mxu0 0.0
    %374 = vmatpush1.msra.mxu0 %v201
    %375 = vmatprep.subr.mxu0 0.0
    %376 = vmatpush1.msra.mxu0 %v280
    %377 = vmatprep.subr.mxu0 0.0
    %378 = vmatpush1.msra.mxu0 %v359
    %379 = vmatprep.subr.mxu0 0.0
    %380 = vmatpush1.msra.mxu0 0.0
    %381 = vmatprep.subr.mxu0 0.0
    %382 = vmatpush1.msra.mxu0 0.0
    %383 = vmatprep.subr.mxu0 0.0
    %384 = vmatpush1.msra.mxu0 0.0
    %385 = vmatprep.subr.mxu0 0.0
    %386 = vmatpush1.msra.mxu0 0.0
    %387 = vmatprep.subr.mxu0 0.0
    %388 = vmatpush1.msra.mxu0 0.0
    %389 = vmatprep.subr.mxu0 0.0
    %390 = vmatpush1.msra.mxu0 0.0
    %391 = vmatprep.subr.mxu0 0.0
    %392 = vmatpush1.msra.mxu0 0.0
    %393 = vmatprep.subr.mxu0 0.0
    %394 = vmatpush1.msra.mxu0 0.0
    %395 = vmatprep.subr.mxu0 0.0
    %396 = vmatpush1.msra.mxu0 0.0
    %397 = vmatprep.subr.mxu0 0.0
    %398 = vmatpush1.msra.mxu0 0.0
    %399 = vmatprep.subr.mxu0 0.0
    %400 = vmatpush1.msra.mxu0 0.0
    %401 = vmatprep.subr.mxu0 0.0
    %402 = vmatpush1.msra.mxu0 0.0
    %403 = vmatprep.subr.mxu0 0.0
    %404 = vmatpush1.msra.mxu0 0.0
    %405 = vmatprep.subr.mxu0 0.0
    %406 = vmatpush1.msra.mxu0 0.0
    %407 = vmatprep.subr.mxu0 0.0
    %408 = vmatpush1.msra.mxu0 0.0
    %409 = vmatprep.subr.mxu0 0.0
    %410 = vmatpush1.msra.mxu0 0.0
    %411 = vmatprep.subr.mxu0 0.0
    %412 = vmatpush1.msra.mxu0 0.0
    %413 = vmatprep.subr.mxu0 0.0
    %414 = vmatpush1.msra.mxu0 0.0
    %415 = vmatprep.subr.mxu0 0.0
    %416 = vmatpush1.msra.mxu0 0.0
    %417 = vmatprep.subr.mxu0 0.0
    %418 = vmatpush1.msra.mxu0 0.0
    %419 = vmatprep.subr.mxu0 0.0
    %420 = vmatpush1.msra.mxu0 0.0
    %421 = vmatprep.subr.mxu0 0.0
    %422 = vmatpush1.msra.mxu0 0.0
    %423 = vmatprep.subr.mxu0 0.0
    %424 = vmatpush1.msra.mxu0 0.0
    %425 = vmatprep.subr.mxu0 0.0
    %426 = vmatpush1.msra.mxu0 0.0
    %427 = vmatprep.subr.mxu0 0.0
    %428 = vmatpush1.msra.mxu0 0.0
    %429 = vmatprep.subr.mxu0 0.0
    %430 = vmatpush1.msra.mxu0 0.0
    %431 = vmatprep.subr.mxu0 0.0
    %432 = vmatpush1.msra.mxu0 0.0
    %433 = vmatprep.subr.mxu0 0.0
    %434 = vmatpush1.msra.mxu0 0.0
    %435 = vmatprep.subr.mxu0 0.0
    %436 = vmatpush1.msra.mxu0 0.0
    %437 = vmatprep.mubr.f32.mxu0 0.0
    %438 = vmatmul.mubr.f32.gmra.mrb[0].mxu0 %v371
    %v439 = vpop.f32.mrb[0].mxu0
    %v440 = vadd.f32 %v367, %v439
    %v441 = vpop.f32.mrb[0].mxu0
    %442 = vdwg.mxu0
    %v443 = vmax.f32 %v440, 0.0
    %v444 = vld [vmem:[%s6] sm:$0xff]
    %v445 = vmul.f32 %v443, %v444
    %v446 = vld [vmem:[%s7] sm:$0xff]
    %v447 = vld [vmem:[%s7 + $0x8] sm:$0xff]
    %v448 = vld [vmem:[%s7 + $0x10] sm:$0xff]
    %v449 = vld [vmem:[%s7 + $0x18] sm:$0xff]
    %v450 = vld [vmem:[%s7 + $0x20] sm:$0xff]
    %vm451 = vcmask 326656
    %v453 = vsel %vm451, %v445, 0
    %455 = vmatprep.subr.mxu0 0.0
    %456 = vmatpush1.msra.mxu0 %v446
    %457 = vmatprep.subr.mxu0 0.0
    %458 = vmatpush1.msra.mxu0 %v447
    %459 = vmatprep.subr.mxu0 0.0
    %460 = vmatpush1.msra.mxu0 %v448
    %461 = vmatprep.subr.mxu0 0.0
    %462 = vmatpush1.msra.mxu0 %v449
    %463 = vmatprep.subr.mxu0 0.0
    %464 = vmatpush1.msra.mxu0 %v450
    %465 = vmatprep.subr.mxu0 0.0
    %466 = vmatpush1.msra.mxu0 0.0
    %467 = vmatprep.subr.mxu0 0.0
    %468 = vmatpush1.msra.mxu0 0.0
    %469 = vmatprep.subr.mxu0 0.0
    %470 = vmatpush1.msra.mxu0 0.0
    %471 = vmatprep.subr.mxu0 0.0
    %472 = vmatpush1.msra.mxu0 0.0
    %473 = vmatprep.subr.mxu0 0.0
    %474 = vmatpush1.msra.mxu0 0.0
    %475 = vmatprep.subr.mxu0 0.0
    %476 = vmatpush1.msra.mxu0 0.0
    %477 = vmatprep.subr.mxu0 0.0
    %478 = vmatpush1.msra.mxu0 0.0
    %479 = vmatprep.subr.mxu0 0.0
    %480 = vmatpush1.msra.mxu0 0.0
    %481 = vmatprep.subr.mxu0 0.0
    %482 = vmatpush1.msra.mxu0 0.0
    %483 = vmatprep.subr.mxu0 0.0
    %484 = vmatpush1.msra.mxu0 0.0
    %485 = vmatprep.subr.mxu0 0.0
    %486 = vmatpush1.msra.mxu0 0.0
    %487 = vmatprep.subr.mxu0 0.0
    %488 = vmatpush1.msra.mxu0 0.0
    %489 = vmatprep.subr.mxu0 0.0
    %490 = vmatpush1.msra.mxu0 0.0
    %491 = vmatprep.subr.mxu0 0.0
    %492 = vmatpush1.msra.mxu0 0.0
    %493 = vmatprep.subr.mxu0 0.0
    %494 = vmatpush1.msra.mxu0 0.0
    %495 = vmatprep.subr.mxu0 0.0
    %496 = vmatpush1.msra.mxu0 0.0
    %497 = vmatprep.subr.mxu0 0.0
    %498 = vmatpush1.msra.mxu0 0.0
    %499 = vmatprep.subr.mxu0 0.0
    %500 = vmatpush1.msra.mxu0 0.0
    %501 = vmatprep.subr.mxu0 0.0
    %502 = vmatpush1.msra.mxu0 0.0
    %503 = vmatprep.subr.mxu0 0.0
    %504 = vmatpush1.msra.mxu0 0.0
    %505 = vmatprep.subr.mxu0 0.0
    %506 = vmatpush1.msra.mxu0 0.0
    %507 = vmatprep.subr.mxu0 0.0
    %508 = vmatpush1.msra.mxu0 0.0
    %509 = vmatprep.subr.mxu0 0.0
    %510 = vmatpush1.msra.mxu0 0.0
    %511 = vmatprep.subr.mxu0 0.0
    %512 = vmatpush1.msra.mxu0 0.0
    %513 = vmatprep.subr.mxu0 0.0
    %514 = vmatpush1.msra.mxu0 0.0
    %515 = vmatprep.subr.mxu0 0.0
    %516 = vmatpush1.msra.mxu0 0.0
    %517 = vmatprep.subr.mxu0 0.0
    %518 = vmatpush1.msra.mxu0 0.0
    %519 = vmatprep.mubr.f32.mxu0 0.0
    %520 = vmatmul.mubr.f32.gmra.mrb[0].mxu0 %v453
    %v521 = vpop.f32.mrb[0].mxu0
    %v522 = vadd.f32 0.0, %v521
    %v523 = vpop.f32.mrb[0].mxu0
    %524 = vdwg.mxu0
    %vm525 = vcmask 15360
    %v526 = vsel %vm525, %v522, 0.0
    %v527 = vrot.slane %v526, 4
    %v528 = vadd.f32 %v526, %v527
    %v529 = vrot.slane %v528, 2
    %v530 = vadd.f32 %v528, %v529
    %v531 = vrot.slane %v530, 1
    %v532 = vadd.f32 %v530, %v531
    %s533 = sld [smem:[#allocation2]]
    %v534 = vstv %s533
    %v535 = vadd.f32 %v532, %v534
    %vm536 = vcmask 8192
    %537 = vst.msk [vmem:[#allocation3] sm:$0x1] %vm536, %v535
    // Predicated region
    $region38: #{tcn_forward.1} parent=1 // pred_check
      _
    $region39: #{tcn_forward.1} parent=1 // pred_check_branch
      %539 = sbr.rel (0) target = $region41
    $region40: #{tcn_forward.1} parent=1 // pred_region
      %s541 = ssub.s32 16, 16
      %542 = vsyncadd [#allocation4], %s541
      %s544 = sshll.u32 [#allocation3], 4
      %s545 = int_to_ptr.vmem [resolvable:$true] %s544
      %547 = dma.vmem_to_hbm [thread:$0]  %s545, 16, %s9, [#allocation4]
    $region41: #{tcn_forward.1} parent=1 // pred_fallthru
      _
    // Predicated region
    $region42: #{tcn_forward.1} parent=1 // pred_check
      _
    $region43: #{tcn_forward.1} parent=1 // pred_check_branch
      %549 = sbr.rel (0) target = $region45
    $region44: #{tcn_forward.1} parent=1 // pred_region
      %550 = dma.done [#allocation4], 16
    $region45: #{tcn_forward.1} parent=1 // pred_fallthru
      _
    %551 = vsyncpa [#allocation4], 1

</llo_original>
